<compile_context>
chip_gen: v7x
topology: tpu7x:2x2x1
jax: 0.10.0
libtpu: 0.0.40
codegen_flags: <defaults>
</compile_context>

<pallas_src>
import functools
import math

import jax
import jax.numpy as jnp
from jax.experimental import pallas as pl
from jax.experimental.pallas import tpu as pltpu


def _rmlm_kernel(f_ref, g_ref, rf_ref, rg_ref, o_ref, *, scale):
    # Two MXU matmuls on the current (tm, K) x (K, tn) tiles, fused with the
    # elementwise multiply and the 1/sqrt(output_dim) scaling (all in f32).
    fr = jnp.dot(f_ref[...], rf_ref[...], preferred_element_type=jnp.float32)
    gr = jnp.dot(g_ref[...], rg_ref[...], preferred_element_type=jnp.float32)
    o_ref[...] = (fr * gr * scale).astype(o_ref.dtype)


def _largest_tile(dim, max_tile, granularity):
    """Largest t <= max_tile with dim % t == 0 and t % granularity == 0.

    Falls back to the full dimension (always a legal block shape) if no such
    tile exists.
    """
    if dim <= max_tile:
        return dim
    t = (max_tile // granularity) * granularity
    while t >= granularity:
        if dim % t == 0:
            return t
        t -= granularity
    return dim


def randomized_multi_linear_map(f, g, Rf, Rg, *, tm=None, tn=None, use_bf16=False):
    """Fused (f @ Rf) * (g @ Rg) / sqrt(output_dim) on TPU via Pallas."""
    B, features_dim = f.shape
    _, num_classes = g.shape
    output_dim = Rf.shape[1]
    assert Rf.shape == (features_dim, output_dim)
    assert Rg.shape == (num_classes, output_dim)

    out_dtype = f.dtype
    if use_bf16:
        # Random-projection weights tolerate bf16 easily; accumulation and the
        # multiply/scale stay in f32 inside the kernel.
        f, g, Rf, Rg = (x.astype(jnp.bfloat16) for x in (f, g, Rf, Rg))

    # ---- tile selection ----------------------------------------------------
    # M (batch) tile: whole batch if small (=> Rf/Rg streamed exactly once),
    # otherwise the largest multiple of 8 up to 256 that divides B.
    if tm is None:
        tm = B if B <= 512 else _largest_tile(B, 256, 8)
    # N (output-column) tile: big lane-dense slabs, multiple of 128.
    if tn is None:
        tn = output_dim if output_dim <= 1024 else _largest_tile(output_dim, 1024, 128)
    assert B % tm == 0 and output_dim % tn == 0, (tm, tn)

    grid_i = B // tm            # batch tiles
    grid_j = output_dim // tn   # output-column tiles

    scale = 1.0 / math.sqrt(float(output_dim))
    kernel = functools.partial(_rmlm_kernel, scale=scale)

    if grid_i == 1:
        # Whole batch in one tile: 1-D grid over output columns only.
        grid = (grid_j,)
        f_map = lambda j: (0, 0)
        g_map = lambda j: (0, 0)
        rf_map = lambda j: (0, j)
        rg_map = lambda j: (0, j)
        o_map = lambda j: (0, j)
        dims = ("parallel",)
    else:
        # Output-column axis OUTER, batch axis inner: Rf/Rg block indices are
        # constant across the inner loop, so Pallas skips their re-DMA and the
        # big matrices are read from HBM only once per column tile; only the
        # tiny f/g tiles re-stream. The leading 'parallel' axis also shards
        # cleanly across the two v7x TensorCores (disjoint Rf/Rg halves).
        grid = (grid_j, grid_i)
        f_map = lambda j, i: (i, 0)
        g_map = lambda j, i: (i, 0)
        rf_map = lambda j, i: (0, j)
        rg_map = lambda j, i: (0, j)
        o_map = lambda j, i: (i, j)
        dims = ("parallel", "parallel")

    # Raise the scoped-VMEM limit above the default when tiles are large.
    # Each of the 5 blocks is double-buffered; cap at 64 MiB (v7x physical).
    in_isz = jnp.dtype(f.dtype).itemsize
    out_isz = jnp.dtype(out_dtype).itemsize
    blk_bytes = (2 * in_isz * (tm * features_dim + tm * num_classes
                               + features_dim * tn + num_classes * tn)
                 + 2 * out_isz * tm * tn)
    vmem_limit = int(min(64 * 1024 * 1024, max(32 * 1024 * 1024, 3 * blk_bytes)))

    return pl.pallas_call(
        kernel,
        out_shape=jax.ShapeDtypeStruct((B, output_dim), out_dtype),
        grid_spec=pltpu.PrefetchScalarGridSpec(
            num_scalar_prefetch=0,
            grid=grid,
            in_specs=[
                # f tile: (tm, features_dim) -- full contraction dim per tile.
                pl.BlockSpec((tm, features_dim), f_map),
                # g tile: (tm, num_classes)
                pl.BlockSpec((tm, num_classes), g_map),
                # Rf tile: (features_dim, tn)
                pl.BlockSpec((features_dim, tn), rf_map),
                # Rg tile: (num_classes, tn)
                pl.BlockSpec((num_classes, tn), rg_map),
            ],
            out_specs=pl.BlockSpec((tm, tn), o_map),
        ),
        compiler_params=pltpu.CompilerParams(
            dimension_semantics=dims,
            vmem_limit_bytes=vmem_limit,
        ),
    )(f, g, Rf, Rg)


if __name__ == "__main__":
    # Small, module-consistent shapes (PyTorch default output_dim=1024).
    batch = 8
    features_dim = 32
    num_classes = 8
    output_dim = 1024

    key = jax.random.PRNGKey(0)
    kf, kg, krf, krg = jax.random.split(key, 4)

    f = jax.random.normal(kf, (batch, features_dim), dtype=jnp.float32)
    g = jax.nn.softmax(
        jax.random.normal(kg, (batch, num_classes), dtype=jnp.float32), axis=-1
    )
    # Deterministic stand-ins for torch.randn(features_dim, output_dim), etc.
    Rf = jax.random.normal(krf, (features_dim, output_dim), dtype=jnp.float32)
    Rg = jax.random.normal(krg, (num_classes, output_dim), dtype=jnp.float32)

    ref = (f @ Rf) * (g @ Rg) / jnp.sqrt(jnp.float32(output_dim))

    # 1) Default path (small B): whole batch as one tile, 1-D grid over columns.
    out = jax.block_until_ready(randomized_multi_linear_map(f, g, Rf, Rg))
    assert out.shape == (batch, output_dim)
    assert jnp.allclose(out, ref, atol=1e-4, rtol=1e-4)

    # 2) Exercise the 2-D grid path (output-column axis outermost, batch inner)
    #    with a slightly larger batch and forced small tiles.
    B2, D2 = 32, 512
    f2 = jax.random.normal(kf, (B2, features_dim), dtype=jnp.float32)
    g2 = jax.nn.softmax(
        jax.random.normal(kg, (B2, num_classes), dtype=jnp.float32), axis=-1
    )
    Rf2 = jax.random.normal(krf, (features_dim, D2), dtype=jnp.float32)
    Rg2 = jax.random.normal(krg, (num_classes, D2), dtype=jnp.float32)
    ref2 = (f2 @ Rf2) * (g2 @ Rg2) / jnp.sqrt(jnp.float32(D2))
    out2 = jax.block_until_ready(
        randomized_multi_linear_map(f2, g2, Rf2, Rg2, tm=8, tn=128)
    )
    assert out2.shape == (B2, D2)
    assert jnp.allclose(out2, ref2, atol=1e-3, rtol=1e-3)

    # 3) bf16-operand variant (halves HBM traffic on v6e/v7x); f32 accumulate,
    #    so only a loose tolerance hit.
    out_bf16 = jax.block_until_ready(
        randomized_multi_linear_map(f, g, Rf, Rg, use_bf16=True)
    )
    assert jnp.allclose(out_bf16, ref, atol=5e-2, rtol=5e-2)

    print("KERNEL_OK")
</pallas_src>

<mosaic_0001>
module attributes {stable_mosaic.version = 11 : i64} {
  func.func @_rmlm_kernel(%arg0: i32, %arg1: memref<8x32xf32, #tpu.memory_space<vmem>>, %arg2: memref<8x8xf32, #tpu.memory_space<vmem>>, %arg3: memref<32x1024xf32, #tpu.memory_space<vmem>>, %arg4: memref<8x1024xf32, #tpu.memory_space<vmem>>, %arg5: memref<8x1024xf32, #tpu.memory_space<vmem>>) attributes {dimension_semantics = [#tpu.dimension_semantics<parallel>], iteration_bounds = array<i64: 1>, scalar_prefetch = 0 : i64, scratch_operands = 0 : i64, tpu.core_type = #tpu.core_type<tc>, window_params = [{pipeline_mode = #tpu.pipeline_mode<synchronous>, transform_indices = @transform_0, window_bounds = array<i64: 8, 32>}, {pipeline_mode = #tpu.pipeline_mode<synchronous>, transform_indices = @transform_1, window_bounds = array<i64: 8, 8>}, {transform_indices = @transform_2, window_bounds = array<i64: 32, 1024>}, {transform_indices = @transform_3, window_bounds = array<i64: 8, 1024>}, {transform_indices = @transform_4, window_bounds = array<i64: 8, 1024>}]} {
    %c0 = arith.constant 0 : index
    %c0_0 = arith.constant 0 : index
    %0 = vector.load %arg1[%c0, %c0_0] : memref<8x32xf32, #tpu.memory_space<vmem>>, vector<8x32xf32>
    %c0_1 = arith.constant 0 : index
    %c0_2 = arith.constant 0 : index
    %1 = vector.load %arg3[%c0_1, %c0_2] : memref<32x1024xf32, #tpu.memory_space<vmem>>, vector<32x1024xf32>
    %cst = arith.constant dense<0.000000e+00> : vector<8x1024xf32>
    %2 = tpu.matmul %0, %1, %cst {dimension_numbers = #tpu.dot_dimension_numbers<[1], [0], [0], [1], [0, 0, 1, 1], [], []>} : vector<8x32xf32>, vector<32x1024xf32>, vector<8x1024xf32> -> vector<8x1024xf32>
    %c0_3 = arith.constant 0 : index
    %c0_4 = arith.constant 0 : index
    %3 = vector.load %arg2[%c0_3, %c0_4] : memref<8x8xf32, #tpu.memory_space<vmem>>, vector<8x8xf32>
    %c0_5 = arith.constant 0 : index
    %c0_6 = arith.constant 0 : index
    %4 = vector.load %arg4[%c0_5, %c0_6] : memref<8x1024xf32, #tpu.memory_space<vmem>>, vector<8x1024xf32>
    %cst_7 = arith.constant dense<0.000000e+00> : vector<8x1024xf32>
    %5 = tpu.matmul %3, %4, %cst_7 {dimension_numbers = #tpu.dot_dimension_numbers<[1], [0], [0], [1], [0, 0, 1, 1], [], []>} : vector<8x8xf32>, vector<8x1024xf32>, vector<8x1024xf32> -> vector<8x1024xf32>
    %6 = arith.mulf %2, %5 : vector<8x1024xf32>
    %cst_8 = arith.constant 3.125000e-02 : f32
    %7 = vector.broadcast %cst_8 : f32 to vector<8x1024xf32>
    %8 = arith.mulf %6, %7 : vector<8x1024xf32>
    %c0_9 = arith.constant 0 : index
    %c0_10 = arith.constant 0 : index
    %9 = vector.load %arg5[%c0_9, %c0_10] : memref<8x1024xf32, #tpu.memory_space<vmem>>, vector<8x1024xf32>
    tpu.vector_store %arg5[%c0_9, %c0_10], %8 {strides = array<i32>} : memref<8x1024xf32, #tpu.memory_space<vmem>>, vector<8x1024xf32>,
    return
  }
  func.func @transform_0(%arg0: i32) -> (i32, i32) {
    %c0_i32 = arith.constant 0 : i32
    %c0_i32_0 = arith.constant 0 : i32
    %c0_i32_1 = arith.constant 0 : i32
    return %c0_i32, %c0_i32_0 : i32, i32
  }
  func.func @transform_1(%arg0: i32) -> (i32, i32) {
    %c0_i32 = arith.constant 0 : i32
    %c0_i32_0 = arith.constant 0 : i32
    %c0_i32_1 = arith.constant 0 : i32
    return %c0_i32, %c0_i32_0 : i32, i32
  }
  func.func @transform_2(%arg0: i32) -> (i32, i32) {
    %c0_i32 = arith.constant 0 : i32
    %c0_i32_0 = arith.constant 0 : i32
    return %c0_i32, %arg0 : i32, i32
  }
  func.func @transform_3(%arg0: i32) -> (i32, i32) {
    %c0_i32 = arith.constant 0 : i32
    %c0_i32_0 = arith.constant 0 : i32
    return %c0_i32, %arg0 : i32, i32
  }
  func.func @transform_4(%arg0: i32) -> (i32, i32) {
    %c0_i32 = arith.constant 0 : i32
    %c0_i32_0 = arith.constant 0 : i32
    return %c0_i32, %arg0 : i32, i32
  }
}

</mosaic_0001>

<llo_original>
// kernel: tpu_custom_call.1
$region0: #{tpu_custom_call.1}
  #allocation0 [shape = 'u32[]', space=smem, size = 0x4, offset = 0x4, fixed_abs, tag = 'smem constant byte address 0x4 - core index']
  #allocation1 [shape = 'u32[144,128]{1,0:T(1,128)}', space=vmem, size = 0x12000, scoped, tag = 'internal scratch']
  %s0 = inlined_call_operand.hbm [shape: f32[8,32], index: 0, kind: input, shape index: {}]
  %s1 = inlined_call_operand.hbm [shape: f32[8,8], index: 1, kind: input, shape index: {}]
  %s2 = inlined_call_operand.hbm [shape: f32[32,1024], index: 2, kind: input, shape index: {}]
  %s3 = inlined_call_operand.hbm [shape: f32[8,1024], index: 3, kind: input, shape index: {}]
  %s4 = inlined_call_operand.hbm [shape: f32[8,1024], index: 4, kind: output, shape index: {}]
  %s5 = sld [smem:[#allocation0]]
  $region42: #{tpu_custom_call.1} parent=0
    _
  %s7 = ssub.s32 1, %s5
  %s8 = scalar_select 0, %s7, %s5
  $region1: #{tpu_custom_call.1} parent=0
    #allocation2 [shape = 'u8[4096]{0}', space=vmem, size = 0x1000, scoped, tag = 'input window, operand 0, single buffered']
    #allocation3 [shape = 's32[1]{0}', space=sflag, size = 0x4, scoped, tag = 'scoped memory for tpu_custom_call.1']
    #allocation4 [shape = 's32[1]{0}', space=sflag, size = 0x4, scoped, tag = 'scoped memory for tpu_custom_call.1']
    #allocation5 [shape = 'u8[4096]{0}', space=vmem, size = 0x1000, scoped, tag = 'input window, operand 1, single buffered']
    #allocation6 [shape = 's32[1]{0}', space=sflag, size = 0x4, scoped, tag = 'scoped memory for tpu_custom_call.1']
    #allocation7 [shape = 'u8[131072]{0}', space=vmem, size = 0x20000, scoped, tag = 'input window, operand 2, single buffered']
    #allocation8 [shape = 'u8[32768]{0}', space=vmem, size = 0x8000, scoped, tag = 'input window, operand 3, single buffered']
    #allocation9 [shape = 's32[1]{0}', space=sflag, size = 0x4, scoped, tag = 'scoped memory for tpu_custom_call.1']
    #allocation10 [shape = 'u8[32768]{0}', space=vmem, size = 0x8000, scoped, tag = 'output window, operand 0, single buffered']
    %9 = vsyncpa [#allocation3], 0
    %10 = vsyncpa [#allocation6], 0
    %11 = vsyncpa [#allocation9], 0
    %12 = vsyncpa [#allocation4], 0
    // Predicated region
    $region2: #{tpu_custom_call.1} parent=1 // pred_check
      _
    $region3: #{tpu_custom_call.1} parent=1 // pred_check_branch
      %14 = sbr.rel (0) target = $region5
    $region4: #{tpu_custom_call.1} parent=1 // pred_region
      %s16 = ssub.s32 128, 128
      %17 = vsyncadd [#allocation3], %s16
      %s19 = sshll.u32 [#allocation2], 4
      %s20 = int_to_ptr.vmem [resolvable:$true] %s19
      %22 = dma.hbm_to_vmem [thread:$0]  %s0, 128, %s20, [#allocation3]
    $region5: #{tpu_custom_call.1} parent=1 // pred_fallthru
      _
    // Predicated region
    $region6: #{tpu_custom_call.1} parent=1 // pred_check
      _
    $region7: #{tpu_custom_call.1} parent=1 // pred_check_branch
      %24 = sbr.rel (0) target = $region9
    $region8: #{tpu_custom_call.1} parent=1 // pred_region
      %s26 = ssub.s32 128, 128
      %27 = vsyncadd [#allocation6], %s26
      %s29 = sshll.u32 [#allocation5], 4
      %s30 = int_to_ptr.vmem [resolvable:$true] %s29
      %32 = dma.hbm_to_vmem [thread:$0]  %s1, 128, %s30, [#allocation6]
    $region9: #{tpu_custom_call.1} parent=1 // pred_fallthru
      _
    // Predicated region
    $region10: #{tpu_custom_call.1} parent=1 // pred_check
      _
    $region11: #{tpu_custom_call.1} parent=1 // pred_check_branch
      %34 = sbr.rel (0) target = $region13
    $region12: #{tpu_custom_call.1} parent=1 // pred_region
      %s36 = ssub.s32 4096, 4096
      %37 = vsyncadd [#allocation6], %s36
      %s38 = sshll.u32 [#allocation7], 4
      %s39 = int_to_ptr.vmem [resolvable:$true] %s38
      %44 = dma.hbm_to_vmem [thread:$0]  %s2, 4096, %s39, [#allocation6], 1024, 1024, 64
    $region13: #{tpu_custom_call.1} parent=1 // pred_fallthru
      _
    // Predicated region
    $region14: #{tpu_custom_call.1} parent=1 // pred_check
      _
    $region15: #{tpu_custom_call.1} parent=1 // pred_check_branch
      %46 = sbr.rel (0) target = $region17
    $region16: #{tpu_custom_call.1} parent=1 // pred_region
      %s48 = ssub.s32 1024, 1024
      %49 = vsyncadd [#allocation9], %s48
      %s51 = sshll.u32 [#allocation8], 4
      %s52 = int_to_ptr.vmem [resolvable:$true] %s51
      %54 = dma.hbm_to_vmem [thread:$0]  %s3, 1024, %s52, [#allocation9]
    $region17: #{tpu_custom_call.1} parent=1 // pred_fallthru
      _
    // Predicated region
    $region18: #{tpu_custom_call.1} parent=1 // pred_check
      _
    $region19: #{tpu_custom_call.1} parent=1 // pred_check_branch
      %56 = sbr.rel (0) target = $region21
    $region20: #{tpu_custom_call.1} parent=1 // pred_region
      %57 = dma.done [#allocation3], 128
    $region21: #{tpu_custom_call.1} parent=1 // pred_fallthru
      _
    // Predicated region
    $region22: #{tpu_custom_call.1} parent=1 // pred_check
      _
    $region23: #{tpu_custom_call.1} parent=1 // pred_check_branch
      %59 = sbr.rel (0) target = $region25
    $region24: #{tpu_custom_call.1} parent=1 // pred_region
      %60 = dma.done [#allocation6], 128
    $region25: #{tpu_custom_call.1} parent=1 // pred_fallthru
      _
    // Predicated region
    $region26: #{tpu_custom_call.1} parent=1 // pred_check
      _
    $region27: #{tpu_custom_call.1} parent=1 // pred_check_branch
      %62 = sbr.rel (0) target = $region29
    $region28: #{tpu_custom_call.1} parent=1 // pred_region
      %63 = dma.done [#allocation6], 4096
    $region29: #{tpu_custom_call.1} parent=1 // pred_fallthru
      _
    // Predicated region
    $region30: #{tpu_custom_call.1} parent=1 // pred_check
      _
    $region31: #{tpu_custom_call.1} parent=1 // pred_check_branch
      %65 = sbr.rel (0) target = $region33
    $region32: #{tpu_custom_call.1} parent=1 // pred_region
      %66 = dma.done [#allocation9], 1024
    $region33: #{tpu_custom_call.1} parent=1 // pred_fallthru
      _
    %v67 = vld [vmem:[#allocation2] sm:$0xff]
    %v68 = vld [vmem:[#allocation7] sm:$0xff]
    %v69 = vld [vmem:[#allocation7 + $0x8] sm:$0xff]
    %v70 = vld [vmem:[#allocation7 + $0x10] sm:$0xff]
    %v71 = vld [vmem:[#allocation7 + $0x18] sm:$0xff]
    %v72 = vld [vmem:[#allocation7 + $0x20] sm:$0xff]
    %v73 = vld [vmem:[#allocation7 + $0x28] sm:$0xff]
    %v74 = vld [vmem:[#allocation7 + $0x30] sm:$0xff]
    %v75 = vld [vmem:[#allocation7 + $0x38] sm:$0xff]
    %v76 = vld [vmem:[#allocation7 + $0x40] sm:$0xff]
    %v77 = vld [vmem:[#allocation7 + $0x48] sm:$0xff]
    %v78 = vld [vmem:[#allocation7 + $0x50] sm:$0xff]
    %v79 = vld [vmem:[#allocation7 + $0x58] sm:$0xff]
    %v80 = vld [vmem:[#allocation7 + $0x60] sm:$0xff]
    %v81 = vld [vmem:[#allocation7 + $0x68] sm:$0xff]
    %v82 = vld [vmem:[#allocation7 + $0x70] sm:$0xff]
    %v83 = vld [vmem:[#allocation7 + $0x78] sm:$0xff]
    %v84 = vld [vmem:[#allocation7 + $0x80] sm:$0xff]
    %v85 = vld [vmem:[#allocation7 + $0x88] sm:$0xff]
    %v86 = vld [vmem:[#allocation7 + $0x90] sm:$0xff]
    %v87 = vld [vmem:[#allocation7 + $0x98] sm:$0xff]
    %v88 = vld [vmem:[#allocation7 + $0xa0] sm:$0xff]
    %v89 = vld [vmem:[#allocation7 + $0xa8] sm:$0xff]
    %v90 = vld [vmem:[#allocation7 + $0xb0] sm:$0xff]
    %v91 = vld [vmem:[#allocation7 + $0xb8] sm:$0xff]
    %v92 = vld [vmem:[#allocation7 + $0xc0] sm:$0xff]
    %v93 = vld [vmem:[#allocation7 + $0xc8] sm:$0xff]
    %v94 = vld [vmem:[#allocation7 + $0xd0] sm:$0xff]
    %v95 = vld [vmem:[#allocation7 + $0xd8] sm:$0xff]
    %v96 = vld [vmem:[#allocation7 + $0xe0] sm:$0xff]
    %v97 = vld [vmem:[#allocation7 + $0xe8] sm:$0xff]
    %v98 = vld [vmem:[#allocation7 + $0xf0] sm:$0xff]
    %v99 = vld [vmem:[#allocation7 + $0xf8] sm:$0xff]
    %vm100 = vcmask 261120
    %v102 = vsel %vm100, %v67, 0
    %104 = vmatprep.subr.mxu0 %v69
    %105 = vmatpush1.msra.mxu0 %v68
    %106 = vmatprep.subr.mxu0 %v77
    %107 = vmatpush1.msra.mxu0 %v76
    %108 = vmatprep.subr.mxu0 %v85
    %109 = vmatpush1.msra.mxu0 %v84
    %110 = vmatprep.subr.mxu0 %v93
    %111 = vmatpush1.msra.mxu0 %v92
    %112 = vmatprep.subr.mxu0 0.0
    %113 = vmatpush1.msra.mxu0 0.0
    %114 = vmatprep.subr.mxu0 0.0
    %115 = vmatpush1.msra.mxu0 0.0
    %116 = vmatprep.subr.mxu0 0.0
    %117 = vmatpush1.msra.mxu0 0.0
    %118 = vmatprep.subr.mxu0 0.0
    %119 = vmatpush1.msra.mxu0 0.0
    %120 = vmatprep.subr.mxu0 0.0
    %121 = vmatpush1.msra.mxu0 0.0
    %122 = vmatprep.subr.mxu0 0.0
    %123 = vmatpush1.msra.mxu0 0.0
    %124 = vmatprep.subr.mxu0 0.0
    %125 = vmatpush1.msra.mxu0 0.0
    %126 = vmatprep.subr.mxu0 0.0
    %127 = vmatpush1.msra.mxu0 0.0
    %128 = vmatprep.subr.mxu0 0.0
    %129 = vmatpush1.msra.mxu0 0.0
    %130 = vmatprep.subr.mxu0 0.0
    %131 = vmatpush1.msra.mxu0 0.0
    %132 = vmatprep.subr.mxu0 0.0
    %133 = vmatpush1.msra.mxu0 0.0
    %134 = vmatprep.subr.mxu0 0.0
    %135 = vmatpush1.msra.mxu0 0.0
    %136 = vmatprep.subr.mxu0 0.0
    %137 = vmatpush1.msra.mxu0 0.0
    %138 = vmatprep.subr.mxu0 0.0
    %139 = vmatpush1.msra.mxu0 0.0
    %140 = vmatprep.subr.mxu0 0.0
    %141 = vmatpush1.msra.mxu0 0.0
    %142 = vmatprep.subr.mxu0 0.0
    %143 = vmatpush1.msra.mxu0 0.0
    %144 = vmatprep.subr.mxu0 0.0
    %145 = vmatpush1.msra.mxu0 0.0
    %146 = vmatprep.subr.mxu0 0.0
    %147 = vmatpush1.msra.mxu0 0.0
    %148 = vmatprep.subr.mxu0 0.0
    %149 = vmatpush1.msra.mxu0 0.0
    %150 = vmatprep.subr.mxu0 0.0
    %151 = vmatpush1.msra.mxu0 0.0
    %152 = vmatprep.subr.mxu0 0.0
    %153 = vmatpush1.msra.mxu0 0.0
    %154 = vmatprep.subr.mxu0 0.0
    %155 = vmatpush1.msra.mxu0 0.0
    %156 = vmatprep.subr.mxu0 0.0
    %157 = vmatpush1.msra.mxu0 0.0
    %158 = vmatprep.subr.mxu0 0.0
    %159 = vmatpush1.msra.mxu0 0.0
    %160 = vmatprep.subr.mxu0 0.0
    %161 = vmatpush1.msra.mxu0 0.0
    %162 = vmatprep.subr.mxu0 0.0
    %163 = vmatpush1.msra.mxu0 0.0
    %164 = vmatprep.subr.mxu0 0.0
    %165 = vmatpush1.msra.mxu0 0.0
    %166 = vmatprep.subr.mxu0 0.0
    %167 = vmatpush1.msra.mxu0 0.0
    %168 = vmatprep.mubr.f32.mxu0 0.0
    %169 = vmatmul.mubr.f32.gmra.mrb[0].mxu0 %v102
    %v170 = vpop.f32.mrb[0].mxu0
    %v171 = vadd.f32 0.0, %v170
    %v172 = vpop.f32.mrb[0].mxu0
    %v173 = vadd.f32 0.0, %v172
    %174 = vdwg.mxu0
    %175 = vmatprep.subr.mxu0 %v71
    %176 = vmatpush1.msra.mxu0 %v70
    %177 = vmatprep.subr.mxu0 %v79
    %178 = vmatpush1.msra.mxu0 %v78
    %179 = vmatprep.subr.mxu0 %v87
    %180 = vmatpush1.msra.mxu0 %v86
    %181 = vmatprep.subr.mxu0 %v95
    %182 = vmatpush1.msra.mxu0 %v94
    %183 = vmatprep.subr.mxu0 0.0
    %184 = vmatpush1.msra.mxu0 0.0
    %185 = vmatprep.subr.mxu0 0.0
    %186 = vmatpush1.msra.mxu0 0.0
    %187 = vmatprep.subr.mxu0 0.0
    %188 = vmatpush1.msra.mxu0 0.0
    %189 = vmatprep.subr.mxu0 0.0
    %190 = vmatpush1.msra.mxu0 0.0
    %191 = vmatprep.subr.mxu0 0.0
    %192 = vmatpush1.msra.mxu0 0.0
    %193 = vmatprep.subr.mxu0 0.0
    %194 = vmatpush1.msra.mxu0 0.0
    %195 = vmatprep.subr.mxu0 0.0
    %196 = vmatpush1.msra.mxu0 0.0
    %197 = vmatprep.subr.mxu0 0.0
    %198 = vmatpush1.msra.mxu0 0.0
    %199 = vmatprep.subr.mxu0 0.0
    %200 = vmatpush1.msra.mxu0 0.0
    %201 = vmatprep.subr.mxu0 0.0
    %202 = vmatpush1.msra.mxu0 0.0
    %203 = vmatprep.subr.mxu0 0.0
    %204 = vmatpush1.msra.mxu0 0.0
    %205 = vmatprep.subr.mxu0 0.0
    %206 = vmatpush1.msra.mxu0 0.0
    %207 = vmatprep.subr.mxu0 0.0
    %208 = vmatpush1.msra.mxu0 0.0
    %209 = vmatprep.subr.mxu0 0.0
    %210 = vmatpush1.msra.mxu0 0.0
    %211 = vmatprep.subr.mxu0 0.0
    %212 = vmatpush1.msra.mxu0 0.0
    %213 = vmatprep.subr.mxu0 0.0
    %214 = vmatpush1.msra.mxu0 0.0
    %215 = vmatprep.subr.mxu0 0.0
    %216 = vmatpush1.msra.mxu0 0.0
    %217 = vmatprep.subr.mxu0 0.0
    %218 = vmatpush1.msra.mxu0 0.0
    %219 = vmatprep.subr.mxu0 0.0
    %220 = vmatpush1.msra.mxu0 0.0
    %221 = vmatprep.subr.mxu0 0.0
    %222 = vmatpush1.msra.mxu0 0.0
    %223 = vmatprep.subr.mxu0 0.0
    %224 = vmatpush1.msra.mxu0 0.0
    %225 = vmatprep.subr.mxu0 0.0
    %226 = vmatpush1.msra.mxu0 0.0
    %227 = vmatprep.subr.mxu0 0.0
    %228 = vmatpush1.msra.mxu0 0.0
    %229 = vmatprep.subr.mxu0 0.0
    %230 = vmatpush1.msra.mxu0 0.0
    %231 = vmatprep.subr.mxu0 0.0
    %232 = vmatpush1.msra.mxu0 0.0
    %233 = vmatprep.subr.mxu0 0.0
    %234 = vmatpush1.msra.mxu0 0.0
    %235 = vmatprep.subr.mxu0 0.0
    %236 = vmatpush1.msra.mxu0 0.0
    %237 = vmatprep.subr.mxu0 0.0
    %238 = vmatpush1.msra.mxu0 0.0
    %239 = vmatprep.mubr.f32.mxu0 0.0
    %240 = vmatmul.mubr.f32.gmra.mrb[0].mxu0 %v102
    %v241 = vpop.f32.mrb[0].mxu0
    %v242 = vadd.f32 0.0, %v241
    %v243 = vpop.f32.mrb[0].mxu0
    %v244 = vadd.f32 0.0, %v243
    %245 = vdwg.mxu0
    %246 = vmatprep.subr.mxu0 %v73
    %247 = vmatpush1.msra.mxu0 %v72
    %248 = vmatprep.subr.mxu0 %v81
    %249 = vmatpush1.msra.mxu0 %v80
    %250 = vmatprep.subr.mxu0 %v89
    %251 = vmatpush1.msra.mxu0 %v88
    %252 = vmatprep.subr.mxu0 %v97
    %253 = vmatpush1.msra.mxu0 %v96
    %254 = vmatprep.subr.mxu0 0.0
    %255 = vmatpush1.msra.mxu0 0.0
    %256 = vmatprep.subr.mxu0 0.0
    %257 = vmatpush1.msra.mxu0 0.0
    %258 = vmatprep.subr.mxu0 0.0
    %259 = vmatpush1.msra.mxu0 0.0
    %260 = vmatprep.subr.mxu0 0.0
    %261 = vmatpush1.msra.mxu0 0.0
    %262 = vmatprep.subr.mxu0 0.0
    %263 = vmatpush1.msra.mxu0 0.0
    %264 = vmatprep.subr.mxu0 0.0
    %265 = vmatpush1.msra.mxu0 0.0
    %266 = vmatprep.subr.mxu0 0.0
    %267 = vmatpush1.msra.mxu0 0.0
    %268 = vmatprep.subr.mxu0 0.0
    %269 = vmatpush1.msra.mxu0 0.0
    %270 = vmatprep.subr.mxu0 0.0
    %271 = vmatpush1.msra.mxu0 0.0
    %272 = vmatprep.subr.mxu0 0.0
    %273 = vmatpush1.msra.mxu0 0.0
    %274 = vmatprep.subr.mxu0 0.0
    %275 = vmatpush1.msra.mxu0 0.0
    %276 = vmatprep.subr.mxu0 0.0
    %277 = vmatpush1.msra.mxu0 0.0
    %278 = vmatprep.subr.mxu0 0.0
    %279 = vmatpush1.msra.mxu0 0.0
    %280 = vmatprep.subr.mxu0 0.0
    %281 = vmatpush1.msra.mxu0 0.0
    %282 = vmatprep.subr.mxu0 0.0
    %283 = vmatpush1.msra.mxu0 0.0
    %284 = vmatprep.subr.mxu0 0.0
    %285 = vmatpush1.msra.mxu0 0.0
    %286 = vmatprep.subr.mxu0 0.0
    %287 = vmatpush1.msra.mxu0 0.0
    %288 = vmatprep.subr.mxu0 0.0
    %289 = vmatpush1.msra.mxu0 0.0
    %290 = vmatprep.subr.mxu0 0.0
    %291 = vmatpush1.msra.mxu0 0.0
    %292 = vmatprep.subr.mxu0 0.0
    %293 = vmatpush1.msra.mxu0 0.0
    %294 = vmatprep.subr.mxu0 0.0
    %295 = vmatpush1.msra.mxu0 0.0
    %296 = vmatprep.subr.mxu0 0.0
    %297 = vmatpush1.msra.mxu0 0.0
    %298 = vmatprep.subr.mxu0 0.0
    %299 = vmatpush1.msra.mxu0 0.0
    %300 = vmatprep.subr.mxu0 0.0
    %301 = vmatpush1.msra.mxu0 0.0
    %302 = vmatprep.subr.mxu0 0.0
    %303 = vmatpush1.msra.mxu0 0.0
    %304 = vmatprep.subr.mxu0 0.0
    %305 = vmatpush1.msra.mxu0 0.0
    %306 = vmatprep.subr.mxu0 0.0
    %307 = vmatpush1.msra.mxu0 0.0
    %308 = vmatprep.subr.mxu0 0.0
    %309 = vmatpush1.msra.mxu0 0.0
    %310 = vmatprep.mubr.f32.mxu0 0.0
    %311 = vmatmul.mubr.f32.gmra.mrb[0].mxu0 %v102
    %v312 = vpop.f32.mrb[0].mxu0
    %v313 = vadd.f32 0.0, %v312
    %v314 = vpop.f32.mrb[0].mxu0
    %v315 = vadd.f32 0.0, %v314
    %316 = vdwg.mxu0
    %317 = vmatprep.subr.mxu0 %v75
    %318 = vmatpush1.msra.mxu0 %v74
    %319 = vmatprep.subr.mxu0 %v83
    %320 = vmatpush1.msra.mxu0 %v82
    %321 = vmatprep.subr.mxu0 %v91
    %322 = vmatpush1.msra.mxu0 %v90
    %323 = vmatprep.subr.mxu0 %v99
    %324 = vmatpush1.msra.mxu0 %v98
    %325 = vmatprep.subr.mxu0 0.0
    %326 = vmatpush1.msra.mxu0 0.0
    %327 = vmatprep.subr.mxu0 0.0
    %328 = vmatpush1.msra.mxu0 0.0
    %329 = vmatprep.subr.mxu0 0.0
    %330 = vmatpush1.msra.mxu0 0.0
    %331 = vmatprep.subr.mxu0 0.0
    %332 = vmatpush1.msra.mxu0 0.0
    %333 = vmatprep.subr.mxu0 0.0
    %334 = vmatpush1.msra.mxu0 0.0
    %335 = vmatprep.subr.mxu0 0.0
    %336 = vmatpush1.msra.mxu0 0.0
    %337 = vmatprep.subr.mxu0 0.0
    %338 = vmatpush1.msra.mxu0 0.0
    %339 = vmatprep.subr.mxu0 0.0
    %340 = vmatpush1.msra.mxu0 0.0
    %341 = vmatprep.subr.mxu0 0.0
    %342 = vmatpush1.msra.mxu0 0.0
    %343 = vmatprep.subr.mxu0 0.0
    %344 = vmatpush1.msra.mxu0 0.0
    %345 = vmatprep.subr.mxu0 0.0
    %346 = vmatpush1.msra.mxu0 0.0
    %347 = vmatprep.subr.mxu0 0.0
    %348 = vmatpush1.msra.mxu0 0.0
    %349 = vmatprep.subr.mxu0 0.0
    %350 = vmatpush1.msra.mxu0 0.0
    %351 = vmatprep.subr.mxu0 0.0
    %352 = vmatpush1.msra.mxu0 0.0
    %353 = vmatprep.subr.mxu0 0.0
    %354 = vmatpush1.msra.mxu0 0.0
    %355 = vmatprep.subr.mxu0 0.0
    %356 = vmatpush1.msra.mxu0 0.0
    %357 = vmatprep.subr.mxu0 0.0
    %358 = vmatpush1.msra.mxu0 0.0
    %359 = vmatprep.subr.mxu0 0.0
    %360 = vmatpush1.msra.mxu0 0.0
    %361 = vmatprep.subr.mxu0 0.0
    %362 = vmatpush1.msra.mxu0 0.0
    %363 = vmatprep.subr.mxu0 0.0
    %364 = vmatpush1.msra.mxu0 0.0
    %365 = vmatprep.subr.mxu0 0.0
    %366 = vmatpush1.msra.mxu0 0.0
    %367 = vmatprep.subr.mxu0 0.0
    %368 = vmatpush1.msra.mxu0 0.0
    %369 = vmatprep.subr.mxu0 0.0
    %370 = vmatpush1.msra.mxu0 0.0
    %371 = vmatprep.subr.mxu0 0.0
    %372 = vmatpush1.msra.mxu0 0.0
    %373 = vmatprep.subr.mxu0 0.0
    %374 = vmatpush1.msra.mxu0 0.0
    %375 = vmatprep.subr.mxu0 0.0
    %376 = vmatpush1.msra.mxu0 0.0
    %377 = vmatprep.subr.mxu0 0.0
    %378 = vmatpush1.msra.mxu0 0.0
    %379 = vmatprep.subr.mxu0 0.0
    %380 = vmatpush1.msra.mxu0 0.0
    %381 = vmatprep.mubr.f32.mxu0 0.0
    %382 = vmatmul.mubr.f32.gmra.mrb[0].mxu0 %v102
    %v383 = vpop.f32.mrb[0].mxu0
    %v384 = vadd.f32 0.0, %v383
    %v385 = vpop.f32.mrb[0].mxu0
    %v386 = vadd.f32 0.0, %v385
    %387 = vdwg.mxu0
    %v388 = vld [vmem:[#allocation5] sm:$0xff]
    %v389 = vld [vmem:[#allocation8] sm:$0xff]
    %v390 = vld [vmem:[#allocation8 + $0x8] sm:$0xff]
    %v391 = vld [vmem:[#allocation8 + $0x10] sm:$0xff]
    %v392 = vld [vmem:[#allocation8 + $0x18] sm:$0xff]
    %v393 = vld [vmem:[#allocation8 + $0x20] sm:$0xff]
    %v394 = vld [vmem:[#allocation8 + $0x28] sm:$0xff]
    %v395 = vld [vmem:[#allocation8 + $0x30] sm:$0xff]
    %v396 = vld [vmem:[#allocation8 + $0x38] sm:$0xff]
    %vm397 = vcmask 64512
    %v399 = vsel %vm397, %v388, 0
    %401 = vmatprep.subr.mxu0 %v390
    %402 = vmatpush1.msra.mxu0 %v389
    %403 = vmatprep.subr.mxu0 0.0
    %404 = vmatpush1.msra.mxu0 0.0
    %405 = vmatprep.subr.mxu0 0.0
    %406 = vmatpush1.msra.mxu0 0.0
    %407 = vmatprep.subr.mxu0 0.0
    %408 = vmatpush1.msra.mxu0 0.0
    %409 = vmatprep.subr.mxu0 0.0
    %410 = vmatpush1.msra.mxu0 0.0
    %411 = vmatprep.subr.mxu0 0.0
    %412 = vmatpush1.msra.mxu0 0.0
    %413 = vmatprep.subr.mxu0 0.0
    %414 = vmatpush1.msra.mxu0 0.0
    %415 = vmatprep.subr.mxu0 0.0
    %416 = vmatpush1.msra.mxu0 0.0
    %417 = vmatprep.subr.mxu0 0.0
    %418 = vmatpush1.msra.mxu0 0.0
    %419 = vmatprep.subr.mxu0 0.0
    %420 = vmatpush1.msra.mxu0 0.0
    %421 = vmatprep.subr.mxu0 0.0
    %422 = vmatpush1.msra.mxu0 0.0
    %423 = vmatprep.subr.mxu0 0.0
    %424 = vmatpush1.msra.mxu0 0.0
    %425 = vmatprep.subr.mxu0 0.0
    %426 = vmatpush1.msra.mxu0 0.0
    %427 = vmatprep.subr.mxu0 0.0
    %428 = vmatpush1.msra.mxu0 0.0
    %429 = vmatprep.subr.mxu0 0.0
    %430 = vmatpush1.msra.mxu0 0.0
    %431 = vmatprep.subr.mxu0 0.0
    %432 = vmatpush1.msra.mxu0 0.0
    %433 = vmatprep.subr.mxu0 0.0
    %434 = vmatpush1.msra.mxu0 0.0
    %435 = vmatprep.subr.mxu0 0.0
    %436 = vmatpush1.msra.mxu0 0.0
    %437 = vmatprep.subr.mxu0 0.0
    %438 = vmatpush1.msra.mxu0 0.0
    %439 = vmatprep.subr.mxu0 0.0
    %440 = vmatpush1.msra.mxu0 0.0
    %441 = vmatprep.subr.mxu0 0.0
    %442 = vmatpush1.msra.mxu0 0.0
    %443 = vmatprep.subr.mxu0 0.0
    %444 = vmatpush1.msra.mxu0 0.0
    %445 = vmatprep.subr.mxu0 0.0
    %446 = vmatpush1.msra.mxu0 0.0
    %447 = vmatprep.subr.mxu0 0.0
    %448 = vmatpush1.msra.mxu0 0.0
    %449 = vmatprep.subr.mxu0 0.0
    %450 = vmatpush1.msra.mxu0 0.0
    %451 = vmatprep.subr.mxu0 0.0
    %452 = vmatpush1.msra.mxu0 0.0
    %453 = vmatprep.subr.mxu0 0.0
    %454 = vmatpush1.msra.mxu0 0.0
    %455 = vmatprep.subr.mxu0 0.0
    %456 = vmatpush1.msra.mxu0 0.0
    %457 = vmatprep.subr.mxu0 0.0
    %458 = vmatpush1.msra.mxu0 0.0
    %459 = vmatprep.subr.mxu0 0.0
    %460 = vmatpush1.msra.mxu0 0.0
    %461 = vmatprep.subr.mxu0 0.0
    %462 = vmatpush1.msra.mxu0 0.0
    %463 = vmatprep.subr.mxu0 0.0
    %464 = vmatpush1.msra.mxu0 0.0
    %465 = vmatprep.mubr.f32.mxu0 0.0
    %466 = vmatmul.mubr.f32.gmra.mrb[0].mxu0 %v399
    %v467 = vpop.f32.mrb[0].mxu0
    %v468 = vadd.f32 0.0, %v467
    %v469 = vpop.f32.mrb[0].mxu0
    %v470 = vadd.f32 0.0, %v469
    %471 = vdwg.mxu0
    %472 = vmatprep.subr.mxu0 %v392
    %473 = vmatpush1.msra.mxu0 %v391
    %474 = vmatprep.subr.mxu0 0.0
    %475 = vmatpush1.msra.mxu0 0.0
    %476 = vmatprep.subr.mxu0 0.0
    %477 = vmatpush1.msra.mxu0 0.0
    %478 = vmatprep.subr.mxu0 0.0
    %479 = vmatpush1.msra.mxu0 0.0
    %480 = vmatprep.subr.mxu0 0.0
    %481 = vmatpush1.msra.mxu0 0.0
    %482 = vmatprep.subr.mxu0 0.0
    %483 = vmatpush1.msra.mxu0 0.0
    %484 = vmatprep.subr.mxu0 0.0
    %485 = vmatpush1.msra.mxu0 0.0
    %486 = vmatprep.subr.mxu0 0.0
    %487 = vmatpush1.msra.mxu0 0.0
    %488 = vmatprep.subr.mxu0 0.0
    %489 = vmatpush1.msra.mxu0 0.0
    %490 = vmatprep.subr.mxu0 0.0
    %491 = vmatpush1.msra.mxu0 0.0
    %492 = vmatprep.subr.mxu0 0.0
    %493 = vmatpush1.msra.mxu0 0.0
    %494 = vmatprep.subr.mxu0 0.0
    %495 = vmatpush1.msra.mxu0 0.0
    %496 = vmatprep.subr.mxu0 0.0
    %497 = vmatpush1.msra.mxu0 0.0
    %498 = vmatprep.subr.mxu0 0.0
    %499 = vmatpush1.msra.mxu0 0.0
    %500 = vmatprep.subr.mxu0 0.0
    %501 = vmatpush1.msra.mxu0 0.0
    %502 = vmatprep.subr.mxu0 0.0
    %503 = vmatpush1.msra.mxu0 0.0
    %504 = vmatprep.subr.mxu0 0.0
    %505 = vmatpush1.msra.mxu0 0.0
    %506 = vmatprep.subr.mxu0 0.0
    %507 = vmatpush1.msra.mxu0 0.0
    %508 = vmatprep.subr.mxu0 0.0
    %509 = vmatpush1.msra.mxu0 0.0
    %510 = vmatprep.subr.mxu0 0.0
    %511 = vmatpush1.msra.mxu0 0.0
    %512 = vmatprep.subr.mxu0 0.0
    %513 = vmatpush1.msra.mxu0 0.0
    %514 = vmatprep.subr.mxu0 0.0
    %515 = vmatpush1.msra.mxu0 0.0
    %516 = vmatprep.subr.mxu0 0.0
    %517 = vmatpush1.msra.mxu0 0.0
    %518 = vmatprep.subr.mxu0 0.0
    %519 = vmatpush1.msra.mxu0 0.0
    %520 = vmatprep.subr.mxu0 0.0
    %521 = vmatpush1.msra.mxu0 0.0
    %522 = vmatprep.subr.mxu0 0.0
    %523 = vmatpush1.msra.mxu0 0.0
    %524 = vmatprep.subr.mxu0 0.0
    %525 = vmatpush1.msra.mxu0 0.0
    %526 = vmatprep.subr.mxu0 0.0
    %527 = vmatpush1.msra.mxu0 0.0
    %528 = vmatprep.subr.mxu0 0.0
    %529 = vmatpush1.msra.mxu0 0.0
    %530 = vmatprep.subr.mxu0 0.0
    %531 = vmatpush1.msra.mxu0 0.0
    %532 = vmatprep.subr.mxu0 0.0
    %533 = vmatpush1.msra.mxu0 0.0
    %534 = vmatprep.subr.mxu0 0.0
    %535 = vmatpush1.msra.mxu0 0.0
    %536 = vmatprep.mubr.f32.mxu0 0.0
    %537 = vmatmul.mubr.f32.gmra.mrb[0].mxu0 %v399
    %v538 = vpop.f32.mrb[0].mxu0
    %v539 = vadd.f32 0.0, %v538
    %v540 = vpop.f32.mrb[0].mxu0
    %v541 = vadd.f32 0.0, %v540
    %542 = vdwg.mxu0
    %543 = vmatprep.subr.mxu0 %v394
    %544 = vmatpush1.msra.mxu0 %v393
    %545 = vmatprep.subr.mxu0 0.0
    %546 = vmatpush1.msra.mxu0 0.0
    %547 = vmatprep.subr.mxu0 0.0
    %548 = vmatpush1.msra.mxu0 0.0
    %549 = vmatprep.subr.mxu0 0.0
    %550 = vmatpush1.msra.mxu0 0.0
    %551 = vmatprep.subr.mxu0 0.0
    %552 = vmatpush1.msra.mxu0 0.0
    %553 = vmatprep.subr.mxu0 0.0
    %554 = vmatpush1.msra.mxu0 0.0
    %555 = vmatprep.subr.mxu0 0.0
    %556 = vmatpush1.msra.mxu0 0.0
    %557 = vmatprep.subr.mxu0 0.0
    %558 = vmatpush1.msra.mxu0 0.0
    %559 = vmatprep.subr.mxu0 0.0
    %560 = vmatpush1.msra.mxu0 0.0
    %561 = vmatprep.subr.mxu0 0.0
    %562 = vmatpush1.msra.mxu0 0.0
    %563 = vmatprep.subr.mxu0 0.0
    %564 = vmatpush1.msra.mxu0 0.0
    %565 = vmatprep.subr.mxu0 0.0
    %566 = vmatpush1.msra.mxu0 0.0
    %567 = vmatprep.subr.mxu0 0.0
    %568 = vmatpush1.msra.mxu0 0.0
    %569 = vmatprep.subr.mxu0 0.0
    %570 = vmatpush1.msra.mxu0 0.0
    %571 = vmatprep.subr.mxu0 0.0
    %572 = vmatpush1.msra.mxu0 0.0
    %573 = vmatprep.subr.mxu0 0.0
    %574 = vmatpush1.msra.mxu0 0.0
    %575 = vmatprep.subr.mxu0 0.0
    %576 = vmatpush1.msra.mxu0 0.0
    %577 = vmatprep.subr.mxu0 0.0
    %578 = vmatpush1.msra.mxu0 0.0
    %579 = vmatprep.subr.mxu0 0.0
    %580 = vmatpush1.msra.mxu0 0.0
    %581 = vmatprep.subr.mxu0 0.0
    %582 = vmatpush1.msra.mxu0 0.0
    %583 = vmatprep.subr.mxu0 0.0
    %584 = vmatpush1.msra.mxu0 0.0
    %585 = vmatprep.subr.mxu0 0.0
    %586 = vmatpush1.msra.mxu0 0.0
    %587 = vmatprep.subr.mxu0 0.0
    %588 = vmatpush1.msra.mxu0 0.0
    %589 = vmatprep.subr.mxu0 0.0
    %590 = vmatpush1.msra.mxu0 0.0
    %591 = vmatprep.subr.mxu0 0.0
    %592 = vmatpush1.msra.mxu0 0.0
    %593 = vmatprep.subr.mxu0 0.0
    %594 = vmatpush1.msra.mxu0 0.0
    %595 = vmatprep.subr.mxu0 0.0
    %596 = vmatpush1.msra.mxu0 0.0
    %597 = vmatprep.subr.mxu0 0.0
    %598 = vmatpush1.msra.mxu0 0.0
    %599 = vmatprep.subr.mxu0 0.0
    %600 = vmatpush1.msra.mxu0 0.0
    %601 = vmatprep.subr.mxu0 0.0
    %602 = vmatpush1.msra.mxu0 0.0
    %603 = vmatprep.subr.mxu0 0.0
    %604 = vmatpush1.msra.mxu0 0.0
    %605 = vmatprep.subr.mxu0 0.0
    %606 = vmatpush1.msra.mxu0 0.0
    %607 = vmatprep.mubr.f32.mxu0 0.0
    %608 = vmatmul.mubr.f32.gmra.mrb[0].mxu0 %v399
    %v609 = vpop.f32.mrb[0].mxu0
    %v610 = vadd.f32 0.0, %v609
    %v611 = vpop.f32.mrb[0].mxu0
    %v612 = vadd.f32 0.0, %v611
    %613 = vdwg.mxu0
    %614 = vmatprep.subr.mxu0 %v396
    %615 = vmatpush1.msra.mxu0 %v395
    %616 = vmatprep.subr.mxu0 0.0
    %617 = vmatpush1.msra.mxu0 0.0
    %618 = vmatprep.subr.mxu0 0.0
    %619 = vmatpush1.msra.mxu0 0.0
    %620 = vmatprep.subr.mxu0 0.0
    %621 = vmatpush1.msra.mxu0 0.0
    %622 = vmatprep.subr.mxu0 0.0
    %623 = vmatpush1.msra.mxu0 0.0
    %624 = vmatprep.subr.mxu0 0.0
    %625 = vmatpush1.msra.mxu0 0.0
    %626 = vmatprep.subr.mxu0 0.0
    %627 = vmatpush1.msra.mxu0 0.0
    %628 = vmatprep.subr.mxu0 0.0
    %629 = vmatpush1.msra.mxu0 0.0
    %630 = vmatprep.subr.mxu0 0.0
    %631 = vmatpush1.msra.mxu0 0.0
    %632 = vmatprep.subr.mxu0 0.0
    %633 = vmatpush1.msra.mxu0 0.0
    %634 = vmatprep.subr.mxu0 0.0
    %635 = vmatpush1.msra.mxu0 0.0
    %636 = vmatprep.subr.mxu0 0.0
    %637 = vmatpush1.msra.mxu0 0.0
    %638 = vmatprep.subr.mxu0 0.0
    %639 = vmatpush1.msra.mxu0 0.0
    %640 = vmatprep.subr.mxu0 0.0
    %641 = vmatpush1.msra.mxu0 0.0
    %642 = vmatprep.subr.mxu0 0.0
    %643 = vmatpush1.msra.mxu0 0.0
    %644 = vmatprep.subr.mxu0 0.0
    %645 = vmatpush1.msra.mxu0 0.0
    %646 = vmatprep.subr.mxu0 0.0
    %647 = vmatpush1.msra.mxu0 0.0
    %648 = vmatprep.subr.mxu0 0.0
    %649 = vmatpush1.msra.mxu0 0.0
    %650 = vmatprep.subr.mxu0 0.0
    %651 = vmatpush1.msra.mxu0 0.0
    %652 = vmatprep.subr.mxu0 0.0
    %653 = vmatpush1.msra.mxu0 0.0
    %654 = vmatprep.subr.mxu0 0.0
    %655 = vmatpush1.msra.mxu0 0.0
    %656 = vmatprep.subr.mxu0 0.0
    %657 = vmatpush1.msra.mxu0 0.0
    %658 = vmatprep.subr.mxu0 0.0
    %659 = vmatpush1.msra.mxu0 0.0
    %660 = vmatprep.subr.mxu0 0.0
    %661 = vmatpush1.msra.mxu0 0.0
    %662 = vmatprep.subr.mxu0 0.0
    %663 = vmatpush1.msra.mxu0 0.0
    %664 = vmatprep.subr.mxu0 0.0
    %665 = vmatpush1.msra.mxu0 0.0
    %666 = vmatprep.subr.mxu0 0.0
    %667 = vmatpush1.msra.mxu0 0.0
    %668 = vmatprep.subr.mxu0 0.0
    %669 = vmatpush1.msra.mxu0 0.0
    %670 = vmatprep.subr.mxu0 0.0
    %671 = vmatpush1.msra.mxu0 0.0
    %672 = vmatprep.subr.mxu0 0.0
    %673 = vmatpush1.msra.mxu0 0.0
    %674 = vmatprep.subr.mxu0 0.0
    %675 = vmatpush1.msra.mxu0 0.0
    %676 = vmatprep.subr.mxu0 0.0
    %677 = vmatpush1.msra.mxu0 0.0
    %678 = vmatprep.mubr.f32.mxu0 0.0
    %679 = vmatmul.mubr.f32.gmra.mrb[0].mxu0 %v399
    %v680 = vpop.f32.mrb[0].mxu0
    %v681 = vadd.f32 0.0, %v680
    %v682 = vpop.f32.mrb[0].mxu0
    %v683 = vadd.f32 0.0, %v682
    %684 = vdwg.mxu0
    %v685 = vmul.f32 %v171, %v468
    %v686 = vmul.f32 %v173, %v470
    %v687 = vmul.f32 %v242, %v539
    %v688 = vmul.f32 %v244, %v541
    %v689 = vmul.f32 %v313, %v610
    %v690 = vmul.f32 %v315, %v612
    %v691 = vmul.f32 %v384, %v681
    %v692 = vmul.f32 %v386, %v683
    %v693 = vmul.f32 %v685, 0.03125
    %v694 = vmul.f32 %v686, 0.03125
    %v695 = vmul.f32 %v687, 0.03125
    %v696 = vmul.f32 %v688, 0.03125
    %v697 = vmul.f32 %v689, 0.03125
    %v698 = vmul.f32 %v690, 0.03125
    %v699 = vmul.f32 %v691, 0.03125
    %v700 = vmul.f32 %v692, 0.03125
    %701 = vst [vmem:[#allocation10] sm:$0xff] %v693
    %702 = vst [vmem:[#allocation10 + $0x8] sm:$0xff] %v694
    %703 = vst [vmem:[#allocation10 + $0x10] sm:$0xff] %v695
    %704 = vst [vmem:[#allocation10 + $0x18] sm:$0xff] %v696
    %705 = vst [vmem:[#allocation10 + $0x20] sm:$0xff] %v697
    %706 = vst [vmem:[#allocation10 + $0x28] sm:$0xff] %v698
    %707 = vst [vmem:[#allocation10 + $0x30] sm:$0xff] %v699
    %708 = vst [vmem:[#allocation10 + $0x38] sm:$0xff] %v700
    // Predicated region
    $region34: #{tpu_custom_call.1} parent=1 // pred_check
      _
    $region35: #{tpu_custom_call.1} parent=1 // pred_check_branch
      %710 = sbr.rel (0) target = $region37
    $region36: #{tpu_custom_call.1} parent=1 // pred_region
      %s712 = ssub.s32 1024, 1024
      %713 = vsyncadd [#allocation4], %s712
      %s715 = sshll.u32 [#allocation10], 4
      %s716 = int_to_ptr.vmem [resolvable:$true] %s715
      %718 = dma.vmem_to_hbm [thread:$0]  %s716, 1024, %s4, [#allocation4]
    $region37: #{tpu_custom_call.1} parent=1 // pred_fallthru
      _
    // Predicated region
    $region38: #{tpu_custom_call.1} parent=1 // pred_check
      _
    $region39: #{tpu_custom_call.1} parent=1 // pred_check_branch
      %720 = sbr.rel (0) target = $region41
    $region40: #{tpu_custom_call.1} parent=1 // pred_region
      %721 = dma.done [#allocation4], 1024
    $region41: #{tpu_custom_call.1} parent=1 // pred_fallthru
      _
    %722 = vsyncpa [#allocation3], 1
    %723 = vsyncpa [#allocation6], 1
    %724 = vsyncpa [#allocation9], 1
    %725 = vsyncpa [#allocation4], 1

</llo_original>
